<compile_context>
chip_gen: v7x
topology: tpu7x:2x2x1
jax: 0.10.0
libtpu: 0.0.40
codegen_flags: <defaults>
</compile_context>

<pallas_src>
import math

import jax
import jax.numpy as jnp
from jax import lax
from jax.experimental import pallas as pl
from jax.experimental.pallas import tpu as pltpu


# --------------------------------------------------------------------------------------
# Kernel 1: fused QKV projection + rotary embedding.
# --------------------------------------------------------------------------------------
def _make_qkv_rope_kernel(G: int, hd: int):
    hd2 = hd // 2

    def kernel(x_ref, rope_ref, w_ref, b_ref, q_ref, k_ref, v_ref):
        x = x_ref[0]                                                  # [TR, H] bf16
        # One wide GEMM for q|k|v of G heads (N = 3*G*hd), f32 accumulation + f32 bias.
        qkv = jnp.dot(x, w_ref[0], preferred_element_type=jnp.float32) + b_ref[0]
        cos = rope_ref[0]                                             # [TR, hd2] f32
        sin = rope_ref[1]                                             # [TR, hd2] f32

        for g in range(G):                                            # static unroll
            q = qkv[:, g * hd:(g + 1) * hd]
            k = qkv[:, (G + g) * hd:(G + g + 1) * hd]
            v = qkv[:, (2 * G + g) * hd:(2 * G + g + 1) * hd]
            # Wq/Wk columns are pre-permuted per head (even pair lanes first, then odd),
            # so RoPE is a half/half butterfly.  Results are written straight into the
            # output block with static slices (no in-register concatenate).
            qe, qo = q[:, :hd2], q[:, hd2:]
            ke, ko = k[:, :hd2], k[:, hd2:]
            q_ref[0, g, :, :hd2] = (qe * cos - qo * sin).astype(jnp.bfloat16)
            q_ref[0, g, :, hd2:] = (qe * sin + qo * cos).astype(jnp.bfloat16)
            k_ref[0, g, :, :hd2] = (ke * cos - ko * sin).astype(jnp.bfloat16)
            k_ref[0, g, :, hd2:] = (ke * sin + ko * cos).astype(jnp.bfloat16)
            v_ref[0, g] = v.astype(jnp.bfloat16)

    return kernel


# --------------------------------------------------------------------------------------
# Kernel 2: flash attention (online softmax, causal tile skipping) + fused Wo projection.
# --------------------------------------------------------------------------------------
def _make_flash_wo_kernel(nh: int, hd: int, TQ: int, TK: int):
    NEG = -1e30

    def kernel(q_ref, k_ref, v_ref, wo_ref, bo_ref, o_ref, m_s, l_s, acc_s, att_s):
        qt = pl.program_id(1)
        kv = pl.program_id(2)
        nkv = pl.num_programs(2)
        q_start = qt * TQ
        kv_start = kv * TK

        @pl.when(kv == 0)
        def _init():
            m_s[...] = jnp.full(m_s.shape, NEG, m_s.dtype)
            l_s[...] = jnp.zeros(l_s.shape, l_s.dtype)
            acc_s[...] = jnp.zeros(acc_s.shape, acc_s.dtype)

        # Causal tile skipping: kv tiles fully above the diagonal do no MXU/EUP/VPU work.
        compute = kv_start < q_start + TQ
        # Only diagonal-straddling tiles need the iota/compare/select mask.
        diag = kv_start + TK - 1 > q_start

        def update(masked):
            for h in range(nh):                                       # static unroll
                q = q_ref[0, h]                                       # [TQ, hd] bf16, pre-scaled
                k = k_ref[0, h]                                       # [TK, hd] bf16
                v = v_ref[0, h]                                       # [TK, hd] bf16
                s = lax.dot_general(q, k, (((1,), (1,)), ((), ())),
                                    preferred_element_type=jnp.float32)  # [TQ, TK]
                if masked:
                    row = lax.broadcasted_iota(jnp.int32, (TQ, TK), 0) + q_start
                    col = lax.broadcasted_iota(jnp.int32, (TQ, TK), 1) + kv_start
                    s = jnp.where(col <= row, s, NEG)
                m_prev = m_s[h]                                       # [TQ, 1] f32
                m_new = jnp.maximum(m_prev, jnp.max(s, axis=-1, keepdims=True))
                alpha = jnp.exp(m_prev - m_new)
                p = jnp.exp(s - m_new)
                l_s[h] = alpha * l_s[h] + jnp.sum(p, axis=-1, keepdims=True)
                acc_s[h] = alpha * acc_s[h] + jnp.dot(
                    p.astype(jnp.bfloat16), v, preferred_element_type=jnp.float32)
                m_s[h] = m_new

        @pl.when(jnp.logical_and(compute, diag))
        def _masked_update():
            update(True)

        @pl.when(jnp.logical_and(compute, jnp.logical_not(diag)))
        def _unmasked_update():
            update(False)

        @pl.when(kv == nkv - 1)
        def _finalize():
            # Stage normalized per-head outputs (bf16, static column slices) into a
            # lane-dense [TQ, H] scratch, then ONE output projection with K = H.
            for h in range(nh):
                inv = pl.reciprocal(l_s[h], approx=True)              # EUP slot, ~1e-3 rel err
                att_s[:, h * hd:(h + 1) * hd] = (acc_s[h] * inv).astype(jnp.bfloat16)
            o_ref[0] = (jnp.dot(att_s[...], wo_ref[...],
                                preferred_element_type=jnp.float32)
                        + bo_ref[...]).astype(o_ref.dtype)

    return kernel


# --------------------------------------------------------------------------------------
# Wrapper
# --------------------------------------------------------------------------------------
def attention_pallas(x, cos, sin, params, head_size: int):
    """x: [B, S, H] f32; cos/sin: [S, hd//2] f32; params: torch-style Linear weights."""
    B, S, H = x.shape
    nh = head_size
    assert H % nh == 0, "hidden_dim must be divisible by head_size"
    hd = H // nh
    assert hd % 2 == 0, "head_dim must be even for rotary embedding"
    hd2 = hd // 2

    # Tile sizes (sized so VMEM residency stays within the v7x 64 MiB budget at large S/H).
    TR = S if S <= 256 else 256          # kernel-1 row tile
    TQ = S if S <= 256 else 256          # kernel-2 q tile
    TK = S if S <= 256 else 256          # kernel-2 kv tile
    assert S % TR == 0 and S % TQ == 0 and S % TK == 0, "pad S to a tile multiple"

    # Heads packed per kernel-1 grid step (aim for >=256-wide MXU N tiles on v6e/v7x).
    G = max(1, min(nh, 256 // max(hd, 1)))
    while nh % G:
        G -= 1
    HG = nh // G

    scale = 1.0 / math.sqrt(hd)

    # Per-head rotary permutation: even pair lanes first, then odd pair lanes.
    perm = []
    for h in range(nh):
        perm += [h * hd + 2 * j for j in range(hd2)]
        perm += [h * hd + 2 * j + 1 for j in range(hd2)]
    perm = jnp.asarray(perm, dtype=jnp.int32)

    # PyTorch Linear: y = x @ W^T + b, W: [out, in].  Fold the attention scale into Wq/bq.
    wq_t = params["wq_w"].T[:, perm] * scale
    bq = params["wq_b"][perm] * scale
    wk_t = params["wk_w"].T[:, perm]
    bk = params["wk_b"][perm]
    wv_t = params["wv_w"].T
    bv = params["wv_b"]

    def group_cols(w):                                   # [H, H] -> [HG, H, G*hd]
        return jnp.transpose(w.reshape(H, HG, G * hd), (1, 0, 2))

    wqkv = jnp.concatenate(
        [group_cols(wq_t), group_cols(wk_t), group_cols(wv_t)],
        axis=-1).astype(jnp.bfloat16)                    # [HG, H, 3*G*hd]
    bqkv = jnp.concatenate(
        [bq.reshape(HG, G * hd), bk.reshape(HG, G * hd), bv.reshape(HG, G * hd)],
        axis=-1)[:, None, :].astype(jnp.float32)         # [HG, 1, 3*G*hd]

    rope_tab = jnp.stack([cos, sin], axis=0).astype(jnp.float32)   # [2, S, hd2]
    wo_t = params["wo_w"].T.astype(jnp.bfloat16)                   # [H, H]
    bo = params["wo_b"][None, :].astype(jnp.float32)               # [1, H]

    x_bf = x.astype(jnp.bfloat16)

    vmem_limit = 48 * 1024 * 1024   # sized for the most constrained chip (v7x)

    # ----- Kernel 1: QKV + RoPE -----
    qkv_kernel = _make_qkv_rope_kernel(G=G, hd=hd)
    qkv_out_spec = pl.BlockSpec((1, G, TR, hd), lambda b, hg, r: (b, hg, r, 0))
    q_rot, k_rot, v_heads = pl.pallas_call(
        qkv_kernel,
        out_shape=(jax.ShapeDtypeStruct((B, nh, S, hd), jnp.bfloat16),) * 3,
        grid=(B, HG, S // TR),
        in_specs=[
            pl.BlockSpec((1, TR, H), lambda b, hg, r: (b, r, 0)),          # x tile
            pl.BlockSpec((2, TR, hd2), lambda b, hg, r: (0, r, 0)),        # cos/sin
            pl.BlockSpec((1, H, 3 * G * hd), lambda b, hg, r: (hg, 0, 0)),  # packed Wqkv cols
            pl.BlockSpec((1, 1, 3 * G * hd), lambda b, hg, r: (hg, 0, 0)),  # packed biases
        ],
        out_specs=(qkv_out_spec, qkv_out_spec, qkv_out_spec),
        compiler_params=pltpu.CompilerParams(
            dimension_semantics=("parallel", "parallel", "arbitrary"),
            vmem_limit_bytes=vmem_limit),
    )(x_bf, rope_tab, wqkv, bqkv)

    # ----- Kernel 2: flash attention + fused Wo -----
    attn_kernel = _make_flash_wo_kernel(nh=nh, hd=hd, TQ=TQ, TK=TK)
    out = pl.pallas_call(
        attn_kernel,
        out_shape=jax.ShapeDtypeStruct((B, S, H), x.dtype),
        grid=(B, S // TQ, S // TK),
        in_specs=[
            pl.BlockSpec((1, nh, TQ, hd), lambda b, qt, kv: (b, 0, qt, 0)),  # q tile (all heads)
            pl.BlockSpec((1, nh, TK, hd), lambda b, qt, kv: (b, 0, kv, 0)),  # k tile
            pl.BlockSpec((1, nh, TK, hd), lambda b, qt, kv: (b, 0, kv, 0)),  # v tile
            pl.BlockSpec((H, H), lambda b, qt, kv: (0, 0)),                  # Wo (resident)
            pl.BlockSpec((1, H), lambda b, qt, kv: (0, 0)),                  # bo (resident)
        ],
        out_specs=pl.BlockSpec((1, TQ, H), lambda b, qt, kv: (b, qt, 0)),    # lane-dense [TQ, H]
        scratch_shapes=[
            pltpu.VMEM((nh, TQ, 1), jnp.float32),   # running max m (per head)
            pltpu.VMEM((nh, TQ, 1), jnp.float32),   # running sum l (per head)
            pltpu.VMEM((nh, TQ, hd), jnp.float32),  # unnormalized p@V accumulator
            pltpu.VMEM((TQ, H), jnp.bfloat16),      # staged per-head outputs (Wo input)
        ],
        compiler_params=pltpu.CompilerParams(
            dimension_semantics=("parallel", "parallel", "arbitrary"),
            vmem_limit_bytes=vmem_limit),
    )(q_rot, k_rot, v_heads, wo_t, bo)
    return out


# --------------------------------------------------------------------------------------
# Pure-JAX reference (mirrors the PyTorch forward) for validation.
# --------------------------------------------------------------------------------------
def attention_reference(x, cos, sin, params, head_size: int):
    B, S, H = x.shape
    hd = H // head_size
    hd2 = hd // 2

    def lin(t, w, b):
        return t @ w.T + b

    q = lin(x, params["wq_w"], params["wq_b"]).reshape(B, S, head_size, hd)
    k = lin(x, params["wk_w"], params["wk_b"]).reshape(B, S, head_size, hd)
    v = lin(x, params["wv_w"], params["wv_b"]).reshape(B, S, head_size, hd)

    def rope(t):
        tp = t.reshape(B, S, head_size, hd2, 2)
        te, to = tp[..., 0], tp[..., 1]
        c = cos[None, :, None, :]
        s = sin[None, :, None, :]
        re = te * c - to * s
        im = te * s + to * c
        return jnp.stack([re, im], axis=-1).reshape(B, S, head_size, hd)

    q, k = rope(q), rope(k)
    q = q.transpose(0, 2, 1, 3)
    k = k.transpose(0, 2, 1, 3)
    v = v.transpose(0, 2, 1, 3)

    scores = jnp.einsum("bhqd,bhkd->bhqk", q, k) / math.sqrt(hd)
    mask = jnp.tril(jnp.ones((S, S), dtype=bool))
    scores = jnp.where(mask[None, None], scores, -jnp.inf)
    p = jax.nn.softmax(scores, axis=-1)
    out = jnp.einsum("bhqk,bhkd->bhqd", p, v)
    out = out.transpose(0, 2, 1, 3).reshape(B, S, H)
    return lin(out, params["wo_w"], params["wo_b"])


if __name__ == "__main__":
    B, S, H, head_size = 2, 8, 32, 4
    hd = H // head_size

    key = jax.random.PRNGKey(0)
    keys = jax.random.split(key, 10)
    x = jax.random.normal(keys[0], (B, S, H), dtype=jnp.float32)

    params = {
        "wq_w": 0.1 * jax.random.normal(keys[1], (H, H), dtype=jnp.float32),
        "wq_b": 0.1 * jax.random.normal(keys[2], (H,), dtype=jnp.float32),
        "wk_w": 0.1 * jax.random.normal(keys[3], (H, H), dtype=jnp.float32),
        "wk_b": 0.1 * jax.random.normal(keys[4], (H,), dtype=jnp.float32),
        "wv_w": 0.1 * jax.random.normal(keys[5], (H, H), dtype=jnp.float32),
        "wv_b": 0.1 * jax.random.normal(keys[6], (H,), dtype=jnp.float32),
        "wo_w": 0.1 * jax.random.normal(keys[7], (H, H), dtype=jnp.float32),
        "wo_b": 0.1 * jax.random.normal(keys[8], (H,), dtype=jnp.float32),
    }

    # pos_cis = polar(1, t outer freqs); passed to the kernel as real cos/sin tables.
    theta = 10000.0
    freqs = 1.0 / (theta ** (jnp.arange(0, hd, 2, dtype=jnp.float32) / hd))  # [hd//2]
    angles = jnp.outer(jnp.arange(S, dtype=jnp.float32), freqs)              # [S, hd//2]
    cos, sin = jnp.cos(angles), jnp.sin(angles)

    out = attention_pallas(x, cos, sin, params, head_size)
    out = jax.block_until_ready(out)

    ref = attention_reference(x, cos, sin, params, head_size)
    assert out.shape == (B, S, H)
    # bf16 MXU operands + bf16 q/k/v/att round-trips -> loose tolerance vs. the f32 reference.
    max_diff = jnp.max(jnp.abs(out - ref))
    assert jnp.allclose(out, ref, atol=4e-2, rtol=4e-2), f"max abs diff {max_diff}"

    print("KERNEL_OK")
</pallas_src>

<mosaic_0001>
module attributes {stable_mosaic.version = 11 : i64} {
  func.func @kernel(%arg0: i32, %arg1: i32, %arg2: i32, %arg3: memref<1x8x32xbf16, #tpu.memory_space<vmem>>, %arg4: memref<2x8x4xf32, #tpu.memory_space<vmem>>, %arg5: memref<1x32x96xbf16, #tpu.memory_space<vmem>>, %arg6: memref<1x1x96xf32, #tpu.memory_space<vmem>>, %arg7: memref<1x4x8x8xbf16, #tpu.memory_space<vmem>>, %arg8: memref<1x4x8x8xbf16, #tpu.memory_space<vmem>>, %arg9: memref<1x4x8x8xbf16, #tpu.memory_space<vmem>>) attributes {dimension_semantics = [#tpu.dimension_semantics<parallel>, #tpu.dimension_semantics<parallel>, #tpu.dimension_semantics<arbitrary>], iteration_bounds = array<i64: 2, 1, 1>, scalar_prefetch = 0 : i64, scratch_operands = 0 : i64, tpu.core_type = #tpu.core_type<tc>, window_params = [{transform_indices = @transform_0, window_bounds = array<i64: 1, 8, 32>}, {transform_indices = @transform_1, window_bounds = array<i64: 2, 8, 4>}, {transform_indices = @transform_2, window_bounds = array<i64: 1, 32, 96>}, {transform_indices = @transform_3, window_bounds = array<i64: 1, 1, 96>}, {transform_indices = @transform_4, window_bounds = array<i64: 1, 4, 8, 8>}, {transform_indices = @transform_5, window_bounds = array<i64: 1, 4, 8, 8>}, {transform_indices = @transform_6, window_bounds = array<i64: 1, 4, 8, 8>}]} {
    %c0 = arith.constant 0 : index
    %c0_0 = arith.constant 0 : index
    %c0_1 = arith.constant 0 : index
    %0 = vector.load %arg3[%c0, %c0_0, %c0_1] : memref<1x8x32xbf16, #tpu.memory_space<vmem>>, vector<1x8x32xbf16>
    %1 = vector.shape_cast %0 : vector<1x8x32xbf16> to vector<8x32xbf16>
    %c0_2 = arith.constant 0 : index
    %c0_3 = arith.constant 0 : index
    %c0_4 = arith.constant 0 : index
    %2 = vector.load %arg5[%c0_2, %c0_3, %c0_4] : memref<1x32x96xbf16, #tpu.memory_space<vmem>>, vector<1x32x96xbf16>
    %3 = vector.shape_cast %2 : vector<1x32x96xbf16> to vector<32x96xbf16>
    %cst = arith.constant dense<0.000000e+00> : vector<8x96xf32>
    %4 = tpu.matmul %1, %3, %cst {dimension_numbers = #tpu.dot_dimension_numbers<[1], [0], [0], [1], [0, 0, 1, 1], [], []>} : vector<8x32xbf16>, vector<32x96xbf16>, vector<8x96xf32> -> vector<8x96xf32>
    %c0_5 = arith.constant 0 : index
    %c0_6 = arith.constant 0 : index
    %c0_7 = arith.constant 0 : index
    %5 = vector.load %arg6[%c0_5, %c0_6, %c0_7] : memref<1x1x96xf32, #tpu.memory_space<vmem>>, vector<1x1x96xf32>
    %6 = vector.shape_cast %5 : vector<1x1x96xf32> to vector<1x96xf32>
    %7 = vector.broadcast %6 : vector<1x96xf32> to vector<8x96xf32>
    %8 = arith.addf %4, %7 : vector<8x96xf32>
    %c0_8 = arith.constant 0 : index
    %c0_9 = arith.constant 0 : index
    %c0_10 = arith.constant 0 : index
    %9 = vector.load %arg4[%c0_8, %c0_9, %c0_10] : memref<2x8x4xf32, #tpu.memory_space<vmem>>, vector<1x8x4xf32>
    %10 = vector.shape_cast %9 : vector<1x8x4xf32> to vector<8x4xf32>
    %c1 = arith.constant 1 : index
    %c0_11 = arith.constant 0 : index
    %c0_12 = arith.constant 0 : index
    %11 = vector.load %arg4[%c1, %c0_11, %c0_12] : memref<2x8x4xf32, #tpu.memory_space<vmem>>, vector<1x8x4xf32>
    %12 = vector.shape_cast %11 : vector<1x8x4xf32> to vector<8x4xf32>
    %13 = vector.extract_strided_slice %8 {offsets = [0, 0], sizes = [8, 8], strides = [1, 1]} : vector<8x96xf32> to vector<8x8xf32>
    %14 = vector.extract_strided_slice %8 {offsets = [0, 32], sizes = [8, 8], strides = [1, 1]} : vector<8x96xf32> to vector<8x8xf32>
    %15 = vector.extract_strided_slice %8 {offsets = [0, 64], sizes = [8, 8], strides = [1, 1]} : vector<8x96xf32> to vector<8x8xf32>
    %16 = vector.extract_strided_slice %13 {offsets = [0, 0], sizes = [8, 4], strides = [1, 1]} : vector<8x8xf32> to vector<8x4xf32>
    %17 = vector.extract_strided_slice %13 {offsets = [0, 4], sizes = [8, 4], strides = [1, 1]} : vector<8x8xf32> to vector<8x4xf32>
    %18 = vector.extract_strided_slice %14 {offsets = [0, 0], sizes = [8, 4], strides = [1, 1]} : vector<8x8xf32> to vector<8x4xf32>
    %19 = vector.extract_strided_slice %14 {offsets = [0, 4], sizes = [8, 4], strides = [1, 1]} : vector<8x8xf32> to vector<8x4xf32>
    %20 = arith.mulf %16, %10 : vector<8x4xf32>
    %21 = arith.mulf %17, %12 : vector<8x4xf32>
    %22 = arith.subf %20, %21 : vector<8x4xf32>
    %23 = arith.truncf %22 : vector<8x4xf32> to vector<8x4xbf16>
    %c0_13 = arith.constant 0 : index
    %c0_14 = arith.constant 0 : index
    %c0_15 = arith.constant 0 : index
    %c0_16 = arith.constant 0 : index
    %24 = vector.load %arg7[%c0_13, %c0_14, %c0_15, %c0_16] : memref<1x4x8x8xbf16, #tpu.memory_space<vmem>>, vector<1x1x8x4xbf16>
    %25 = vector.shape_cast %24 : vector<1x1x8x4xbf16> to vector<8x4xbf16>
    %26 = vector.shape_cast %23 : vector<8x4xbf16> to vector<1x1x8x4xbf16>
    tpu.vector_store %arg7[%c0_13, %c0_14, %c0_15, %c0_16], %26 {strides = array<i32>} : memref<1x4x8x8xbf16, #tpu.memory_space<vmem>>, vector<1x1x8x4xbf16>,
    %27 = arith.mulf %16, %12 : vector<8x4xf32>
    %28 = arith.mulf %17, %10 : vector<8x4xf32>
    %29 = arith.addf %27, %28 : vector<8x4xf32>
    %30 = arith.truncf %29 : vector<8x4xf32> to vector<8x4xbf16>
    %c0_17 = arith.constant 0 : index
    %c0_18 = arith.constant 0 : index
    %c0_19 = arith.constant 0 : index
    %c4 = arith.constant 4 : index
    %31 = vector.load %arg7[%c0_17, %c0_18, %c0_19, %c4] : memref<1x4x8x8xbf16, #tpu.memory_space<vmem>>, vector<1x1x8x4xbf16>
    %32 = vector.shape_cast %31 : vector<1x1x8x4xbf16> to vector<8x4xbf16>
    %33 = vector.shape_cast %30 : vector<8x4xbf16> to vector<1x1x8x4xbf16>
    tpu.vector_store %arg7[%c0_17, %c0_18, %c0_19, %c4], %33 {strides = array<i32>} : memref<1x4x8x8xbf16, #tpu.memory_space<vmem>>, vector<1x1x8x4xbf16>,
    %34 = arith.mulf %18, %10 : vector<8x4xf32>
    %35 = arith.mulf %19, %12 : vector<8x4xf32>
    %36 = arith.subf %34, %35 : vector<8x4xf32>
    %37 = arith.truncf %36 : vector<8x4xf32> to vector<8x4xbf16>
    %c0_20 = arith.constant 0 : index
    %c0_21 = arith.constant 0 : index
    %c0_22 = arith.constant 0 : index
    %c0_23 = arith.constant 0 : index
    %38 = vector.load %arg8[%c0_20, %c0_21, %c0_22, %c0_23] : memref<1x4x8x8xbf16, #tpu.memory_space<vmem>>, vector<1x1x8x4xbf16>
    %39 = vector.shape_cast %38 : vector<1x1x8x4xbf16> to vector<8x4xbf16>
    %40 = vector.shape_cast %37 : vector<8x4xbf16> to vector<1x1x8x4xbf16>
    tpu.vector_store %arg8[%c0_20, %c0_21, %c0_22, %c0_23], %40 {strides = array<i32>} : memref<1x4x8x8xbf16, #tpu.memory_space<vmem>>, vector<1x1x8x4xbf16>,
    %41 = arith.mulf %18, %12 : vector<8x4xf32>
    %42 = arith.mulf %19, %10 : vector<8x4xf32>
    %43 = arith.addf %41, %42 : vector<8x4xf32>
    %44 = arith.truncf %43 : vector<8x4xf32> to vector<8x4xbf16>
    %c0_24 = arith.constant 0 : index
    %c0_25 = arith.constant 0 : index
    %c0_26 = arith.constant 0 : index
    %c4_27 = arith.constant 4 : index
    %45 = vector.load %arg8[%c0_24, %c0_25, %c0_26, %c4_27] : memref<1x4x8x8xbf16, #tpu.memory_space<vmem>>, vector<1x1x8x4xbf16>
    %46 = vector.shape_cast %45 : vector<1x1x8x4xbf16> to vector<8x4xbf16>
    %47 = vector.shape_cast %44 : vector<8x4xbf16> to vector<1x1x8x4xbf16>
    tpu.vector_store %arg8[%c0_24, %c0_25, %c0_26, %c4_27], %47 {strides = array<i32>} : memref<1x4x8x8xbf16, #tpu.memory_space<vmem>>, vector<1x1x8x4xbf16>,
    %48 = arith.truncf %15 : vector<8x8xf32> to vector<8x8xbf16>
    %c0_28 = arith.constant 0 : index
    %c0_29 = arith.constant 0 : index
    %c0_30 = arith.constant 0 : index
    %c0_31 = arith.constant 0 : index
    %49 = vector.load %arg9[%c0_28, %c0_29, %c0_30, %c0_31] : memref<1x4x8x8xbf16, #tpu.memory_space<vmem>>, vector<1x1x8x8xbf16>
    %50 = vector.shape_cast %49 : vector<1x1x8x8xbf16> to vector<8x8xbf16>
    %51 = vector.shape_cast %48 : vector<8x8xbf16> to vector<1x1x8x8xbf16>
    tpu.vector_store %arg9[%c0_28, %c0_29, %c0_30, %c0_31], %51 {strides = array<i32>} : memref<1x4x8x8xbf16, #tpu.memory_space<vmem>>, vector<1x1x8x8xbf16>,
    %52 = vector.extract_strided_slice %8 {offsets = [0, 8], sizes = [8, 8], strides = [1, 1]} : vector<8x96xf32> to vector<8x8xf32>
    %53 = vector.extract_strided_slice %8 {offsets = [0, 40], sizes = [8, 8], strides = [1, 1]} : vector<8x96xf32> to vector<8x8xf32>
    %54 = vector.extract_strided_slice %8 {offsets = [0, 72], sizes = [8, 8], strides = [1, 1]} : vector<8x96xf32> to vector<8x8xf32>
    %55 = vector.extract_strided_slice %52 {offsets = [0, 0], sizes = [8, 4], strides = [1, 1]} : vector<8x8xf32> to vector<8x4xf32>
    %56 = vector.extract_strided_slice %52 {offsets = [0, 4], sizes = [8, 4], strides = [1, 1]} : vector<8x8xf32> to vector<8x4xf32>
    %57 = vector.extract_strided_slice %53 {offsets = [0, 0], sizes = [8, 4], strides = [1, 1]} : vector<8x8xf32> to vector<8x4xf32>
    %58 = vector.extract_strided_slice %53 {offsets = [0, 4], sizes = [8, 4], strides = [1, 1]} : vector<8x8xf32> to vector<8x4xf32>
    %59 = arith.mulf %55, %10 : vector<8x4xf32>
    %60 = arith.mulf %56, %12 : vector<8x4xf32>
    %61 = arith.subf %59, %60 : vector<8x4xf32>
    %62 = arith.truncf %61 : vector<8x4xf32> to vector<8x4xbf16>
    %c0_32 = arith.constant 0 : index
    %c1_33 = arith.constant 1 : index
    %c0_34 = arith.constant 0 : index
    %c0_35 = arith.constant 0 : index
    %63 = vector.load %arg7[%c0_32, %c1_33, %c0_34, %c0_35] : memref<1x4x8x8xbf16, #tpu.memory_space<vmem>>, vector<1x1x8x4xbf16>
    %64 = vector.shape_cast %63 : vector<1x1x8x4xbf16> to vector<8x4xbf16>
    %65 = vector.shape_cast %62 : vector<8x4xbf16> to vector<1x1x8x4xbf16>
    tpu.vector_store %arg7[%c0_32, %c1_33, %c0_34, %c0_35], %65 {strides = array<i32>} : memref<1x4x8x8xbf16, #tpu.memory_space<vmem>>, vector<1x1x8x4xbf16>,
    %66 = arith.mulf %55, %12 : vector<8x4xf32>
    %67 = arith.mulf %56, %10 : vector<8x4xf32>
    %68 = arith.addf %66, %67 : vector<8x4xf32>
    %69 = arith.truncf %68 : vector<8x4xf32> to vector<8x4xbf16>
    %c0_36 = arith.constant 0 : index
    %c1_37 = arith.constant 1 : index
    %c0_38 = arith.constant 0 : index
    %c4_39 = arith.constant 4 : index
    %70 = vector.load %arg7[%c0_36, %c1_37, %c0_38, %c4_39] : memref<1x4x8x8xbf16, #tpu.memory_space<vmem>>, vector<1x1x8x4xbf16>
    %71 = vector.shape_cast %70 : vector<1x1x8x4xbf16> to vector<8x4xbf16>
    %72 = vector.shape_cast %69 : vector<8x4xbf16> to vector<1x1x8x4xbf16>
    tpu.vector_store %arg7[%c0_36, %c1_37, %c0_38, %c4_39], %72 {strides = array<i32>} : memref<1x4x8x8xbf16, #tpu.memory_space<vmem>>, vector<1x1x8x4xbf16>,
    %73 = arith.mulf %57, %10 : vector<8x4xf32>
    %74 = arith.mulf %58, %12 : vector<8x4xf32>
    %75 = arith.subf %73, %74 : vector<8x4xf32>
    %76 = arith.truncf %75 : vector<8x4xf32> to vector<8x4xbf16>
    %c0_40 = arith.constant 0 : index
    %c1_41 = arith.constant 1 : index
    %c0_42 = arith.constant 0 : index
    %c0_43 = arith.constant 0 : index
    %77 = vector.load %arg8[%c0_40, %c1_41, %c0_42, %c0_43] : memref<1x4x8x8xbf16, #tpu.memory_space<vmem>>, vector<1x1x8x4xbf16>
    %78 = vector.shape_cast %77 : vector<1x1x8x4xbf16> to vector<8x4xbf16>
    %79 = vector.shape_cast %76 : vector<8x4xbf16> to vector<1x1x8x4xbf16>
    tpu.vector_store %arg8[%c0_40, %c1_41, %c0_42, %c0_43], %79 {strides = array<i32>} : memref<1x4x8x8xbf16, #tpu.memory_space<vmem>>, vector<1x1x8x4xbf16>,
    %80 = arith.mulf %57, %12 : vector<8x4xf32>
    %81 = arith.mulf %58, %10 : vector<8x4xf32>
    %82 = arith.addf %80, %81 : vector<8x4xf32>
    %83 = arith.truncf %82 : vector<8x4xf32> to vector<8x4xbf16>
    %c0_44 = arith.constant 0 : index
    %c1_45 = arith.constant 1 : index
    %c0_46 = arith.constant 0 : index
    %c4_47 = arith.constant 4 : index
    %84 = vector.load %arg8[%c0_44, %c1_45, %c0_46, %c4_47] : memref<1x4x8x8xbf16, #tpu.memory_space<vmem>>, vector<1x1x8x4xbf16>
    %85 = vector.shape_cast %84 : vector<1x1x8x4xbf16> to vector<8x4xbf16>
    %86 = vector.shape_cast %83 : vector<8x4xbf16> to vector<1x1x8x4xbf16>
    tpu.vector_store %arg8[%c0_44, %c1_45, %c0_46, %c4_47], %86 {strides = array<i32>} : memref<1x4x8x8xbf16, #tpu.memory_space<vmem>>, vector<1x1x8x4xbf16>,
    %87 = arith.truncf %54 : vector<8x8xf32> to vector<8x8xbf16>
    %c0_48 = arith.constant 0 : index
    %c1_49 = arith.constant 1 : index
    %c0_50 = arith.constant 0 : index
    %c0_51 = arith.constant 0 : index
    %88 = vector.load %arg9[%c0_48, %c1_49, %c0_50, %c0_51] : memref<1x4x8x8xbf16, #tpu.memory_space<vmem>>, vector<1x1x8x8xbf16>
    %89 = vector.shape_cast %88 : vector<1x1x8x8xbf16> to vector<8x8xbf16>
    %90 = vector.shape_cast %87 : vector<8x8xbf16> to vector<1x1x8x8xbf16>
    tpu.vector_store %arg9[%c0_48, %c1_49, %c0_50, %c0_51], %90 {strides = array<i32>} : memref<1x4x8x8xbf16, #tpu.memory_space<vmem>>, vector<1x1x8x8xbf16>,
    %91 = vector.extract_strided_slice %8 {offsets = [0, 16], sizes = [8, 8], strides = [1, 1]} : vector<8x96xf32> to vector<8x8xf32>
    %92 = vector.extract_strided_slice %8 {offsets = [0, 48], sizes = [8, 8], strides = [1, 1]} : vector<8x96xf32> to vector<8x8xf32>
    %93 = vector.extract_strided_slice %8 {offsets = [0, 80], sizes = [8, 8], strides = [1, 1]} : vector<8x96xf32> to vector<8x8xf32>
    %94 = vector.extract_strided_slice %91 {offsets = [0, 0], sizes = [8, 4], strides = [1, 1]} : vector<8x8xf32> to vector<8x4xf32>
    %95 = vector.extract_strided_slice %91 {offsets = [0, 4], sizes = [8, 4], strides = [1, 1]} : vector<8x8xf32> to vector<8x4xf32>
    %96 = vector.extract_strided_slice %92 {offsets = [0, 0], sizes = [8, 4], strides = [1, 1]} : vector<8x8xf32> to vector<8x4xf32>
    %97 = vector.extract_strided_slice %92 {offsets = [0, 4], sizes = [8, 4], strides = [1, 1]} : vector<8x8xf32> to vector<8x4xf32>
    %98 = arith.mulf %94, %10 : vector<8x4xf32>
    %99 = arith.mulf %95, %12 : vector<8x4xf32>
    %100 = arith.subf %98, %99 : vector<8x4xf32>
    %101 = arith.truncf %100 : vector<8x4xf32> to vector<8x4xbf16>
    %c0_52 = arith.constant 0 : index
    %c2 = arith.constant 2 : index
    %c0_53 = arith.constant 0 : index
    %c0_54 = arith.constant 0 : index
    %102 = vector.load %arg7[%c0_52, %c2, %c0_53, %c0_54] : memref<1x4x8x8xbf16, #tpu.memory_space<vmem>>, vector<1x1x8x4xbf16>
    %103 = vector.shape_cast %102 : vector<1x1x8x4xbf16> to vector<8x4xbf16>
    %104 = vector.shape_cast %101 : vector<8x4xbf16> to vector<1x1x8x4xbf16>
    tpu.vector_store %arg7[%c0_52, %c2, %c0_53, %c0_54], %104 {strides = array<i32>} : memref<1x4x8x8xbf16, #tpu.memory_space<vmem>>, vector<1x1x8x4xbf16>,
    %105 = arith.mulf %94, %12 : vector<8x4xf32>
    %106 = arith.mulf %95, %10 : vector<8x4xf32>
    %107 = arith.addf %105, %106 : vector<8x4xf32>
    %108 = arith.truncf %107 : vector<8x4xf32> to vector<8x4xbf16>
    %c0_55 = arith.constant 0 : index
    %c2_56 = arith.constant 2 : index
    %c0_57 = arith.constant 0 : index
    %c4_58 = arith.constant 4 : index
    %109 = vector.load %arg7[%c0_55, %c2_56, %c0_57, %c4_58] : memref<1x4x8x8xbf16, #tpu.memory_space<vmem>>, vector<1x1x8x4xbf16>
    %110 = vector.shape_cast %109 : vector<1x1x8x4xbf16> to vector<8x4xbf16>
    %111 = vector.shape_cast %108 : vector<8x4xbf16> to vector<1x1x8x4xbf16>
    tpu.vector_store %arg7[%c0_55, %c2_56, %c0_57, %c4_58], %111 {strides = array<i32>} : memref<1x4x8x8xbf16, #tpu.memory_space<vmem>>, vector<1x1x8x4xbf16>,
    %112 = arith.mulf %96, %10 : vector<8x4xf32>
    %113 = arith.mulf %97, %12 : vector<8x4xf32>
    %114 = arith.subf %112, %113 : vector<8x4xf32>
    %115 = arith.truncf %114 : vector<8x4xf32> to vector<8x4xbf16>
    %c0_59 = arith.constant 0 : index
    %c2_60 = arith.constant 2 : index
    %c0_61 = arith.constant 0 : index
    %c0_62 = arith.constant 0 : index
    %116 = vector.load %arg8[%c0_59, %c2_60, %c0_61, %c0_62] : memref<1x4x8x8xbf16, #tpu.memory_space<vmem>>, vector<1x1x8x4xbf16>
    %117 = vector.shape_cast %116 : vector<1x1x8x4xbf16> to vector<8x4xbf16>
    %118 = vector.shape_cast %115 : vector<8x4xbf16> to vector<1x1x8x4xbf16>
    tpu.vector_store %arg8[%c0_59, %c2_60, %c0_61, %c0_62], %118 {strides = array<i32>} : memref<1x4x8x8xbf16, #tpu.memory_space<vmem>>, vector<1x1x8x4xbf16>,
    %119 = arith.mulf %96, %12 : vector<8x4xf32>
    %120 = arith.mulf %97, %10 : vector<8x4xf32>
    %121 = arith.addf %119, %120 : vector<8x4xf32>
    %122 = arith.truncf %121 : vector<8x4xf32> to vector<8x4xbf16>
    %c0_63 = arith.constant 0 : index
    %c2_64 = arith.constant 2 : index
    %c0_65 = arith.constant 0 : index
    %c4_66 = arith.constant 4 : index
    %123 = vector.load %arg8[%c0_63, %c2_64, %c0_65, %c4_66] : memref<1x4x8x8xbf16, #tpu.memory_space<vmem>>, vector<1x1x8x4xbf16>
    %124 = vector.shape_cast %123 : vector<1x1x8x4xbf16> to vector<8x4xbf16>
    %125 = vector.shape_cast %122 : vector<8x4xbf16> to vector<1x1x8x4xbf16>
    tpu.vector_store %arg8[%c0_63, %c2_64, %c0_65, %c4_66], %125 {strides = array<i32>} : memref<1x4x8x8xbf16, #tpu.memory_space<vmem>>, vector<1x1x8x4xbf16>,
    %126 = arith.truncf %93 : vector<8x8xf32> to vector<8x8xbf16>
    %c0_67 = arith.constant 0 : index
    %c2_68 = arith.constant 2 : index
    %c0_69 = arith.constant 0 : index
    %c0_70 = arith.constant 0 : index
    %127 = vector.load %arg9[%c0_67, %c2_68, %c0_69, %c0_70] : memref<1x4x8x8xbf16, #tpu.memory_space<vmem>>, vector<1x1x8x8xbf16>
    %128 = vector.shape_cast %127 : vector<1x1x8x8xbf16> to vector<8x8xbf16>
    %129 = vector.shape_cast %126 : vector<8x8xbf16> to vector<1x1x8x8xbf16>
    tpu.vector_store %arg9[%c0_67, %c2_68, %c0_69, %c0_70], %129 {strides = array<i32>} : memref<1x4x8x8xbf16, #tpu.memory_space<vmem>>, vector<1x1x8x8xbf16>,
    %130 = vector.extract_strided_slice %8 {offsets = [0, 24], sizes = [8, 8], strides = [1, 1]} : vector<8x96xf32> to vector<8x8xf32>
    %131 = vector.extract_strided_slice %8 {offsets = [0, 56], sizes = [8, 8], strides = [1, 1]} : vector<8x96xf32> to vector<8x8xf32>
    %132 = vector.extract_strided_slice %8 {offsets = [0, 88], sizes = [8, 8], strides = [1, 1]} : vector<8x96xf32> to vector<8x8xf32>
    %133 = vector.extract_strided_slice %130 {offsets = [0, 0], sizes = [8, 4], strides = [1, 1]} : vector<8x8xf32> to vector<8x4xf32>
    %134 = vector.extract_strided_slice %130 {offsets = [0, 4], sizes = [8, 4], strides = [1, 1]} : vector<8x8xf32> to vector<8x4xf32>
    %135 = vector.extract_strided_slice %131 {offsets = [0, 0], sizes = [8, 4], strides = [1, 1]} : vector<8x8xf32> to vector<8x4xf32>
    %136 = vector.extract_strided_slice %131 {offsets = [0, 4], sizes = [8, 4], strides = [1, 1]} : vector<8x8xf32> to vector<8x4xf32>
    %137 = arith.mulf %133, %10 : vector<8x4xf32>
    %138 = arith.mulf %134, %12 : vector<8x4xf32>
    %139 = arith.subf %137, %138 : vector<8x4xf32>
    %140 = arith.truncf %139 : vector<8x4xf32> to vector<8x4xbf16>
    %c0_71 = arith.constant 0 : index
    %c3 = arith.constant 3 : index
    %c0_72 = arith.constant 0 : index
    %c0_73 = arith.constant 0 : index
    %141 = vector.load %arg7[%c0_71, %c3, %c0_72, %c0_73] : memref<1x4x8x8xbf16, #tpu.memory_space<vmem>>, vector<1x1x8x4xbf16>
    %142 = vector.shape_cast %141 : vector<1x1x8x4xbf16> to vector<8x4xbf16>
    %143 = vector.shape_cast %140 : vector<8x4xbf16> to vector<1x1x8x4xbf16>
    tpu.vector_store %arg7[%c0_71, %c3, %c0_72, %c0_73], %143 {strides = array<i32>} : memref<1x4x8x8xbf16, #tpu.memory_space<vmem>>, vector<1x1x8x4xbf16>,
    %144 = arith.mulf %133, %12 : vector<8x4xf32>
    %145 = arith.mulf %134, %10 : vector<8x4xf32>
    %146 = arith.addf %144, %145 : vector<8x4xf32>
    %147 = arith.truncf %146 : vector<8x4xf32> to vector<8x4xbf16>
    %c0_74 = arith.constant 0 : index
    %c3_75 = arith.constant 3 : index
    %c0_76 = arith.constant 0 : index
    %c4_77 = arith.constant 4 : index
    %148 = vector.load %arg7[%c0_74, %c3_75, %c0_76, %c4_77] : memref<1x4x8x8xbf16, #tpu.memory_space<vmem>>, vector<1x1x8x4xbf16>
    %149 = vector.shape_cast %148 : vector<1x1x8x4xbf16> to vector<8x4xbf16>
    %150 = vector.shape_cast %147 : vector<8x4xbf16> to vector<1x1x8x4xbf16>
    tpu.vector_store %arg7[%c0_74, %c3_75, %c0_76, %c4_77], %150 {strides = array<i32>} : memref<1x4x8x8xbf16, #tpu.memory_space<vmem>>, vector<1x1x8x4xbf16>,
    %151 = arith.mulf %135, %10 : vector<8x4xf32>
    %152 = arith.mulf %136, %12 : vector<8x4xf32>
    %153 = arith.subf %151, %152 : vector<8x4xf32>
    %154 = arith.truncf %153 : vector<8x4xf32> to vector<8x4xbf16>
    %c0_78 = arith.constant 0 : index
    %c3_79 = arith.constant 3 : index
    %c0_80 = arith.constant 0 : index
    %c0_81 = arith.constant 0 : index
    %155 = vector.load %arg8[%c0_78, %c3_79, %c0_80, %c0_81] : memref<1x4x8x8xbf16, #tpu.memory_space<vmem>>, vector<1x1x8x4xbf16>
    %156 = vector.shape_cast %155 : vector<1x1x8x4xbf16> to vector<8x4xbf16>
    %157 = vector.shape_cast %154 : vector<8x4xbf16> to vector<1x1x8x4xbf16>
    tpu.vector_store %arg8[%c0_78, %c3_79, %c0_80, %c0_81], %157 {strides = array<i32>} : memref<1x4x8x8xbf16, #tpu.memory_space<vmem>>, vector<1x1x8x4xbf16>,
    %158 = arith.mulf %135, %12 : vector<8x4xf32>
    %159 = arith.mulf %136, %10 : vector<8x4xf32>
    %160 = arith.addf %158, %159 : vector<8x4xf32>
    %161 = arith.truncf %160 : vector<8x4xf32> to vector<8x4xbf16>
    %c0_82 = arith.constant 0 : index
    %c3_83 = arith.constant 3 : index
    %c0_84 = arith.constant 0 : index
    %c4_85 = arith.constant 4 : index
    %162 = vector.load %arg8[%c0_82, %c3_83, %c0_84, %c4_85] : memref<1x4x8x8xbf16, #tpu.memory_space<vmem>>, vector<1x1x8x4xbf16>
    %163 = vector.shape_cast %162 : vector<1x1x8x4xbf16> to vector<8x4xbf16>
    %164 = vector.shape_cast %161 : vector<8x4xbf16> to vector<1x1x8x4xbf16>
    tpu.vector_store %arg8[%c0_82, %c3_83, %c0_84, %c4_85], %164 {strides = array<i32>} : memref<1x4x8x8xbf16, #tpu.memory_space<vmem>>, vector<1x1x8x4xbf16>,
    %165 = arith.truncf %132 : vector<8x8xf32> to vector<8x8xbf16>
    %c0_86 = arith.constant 0 : index
    %c3_87 = arith.constant 3 : index
    %c0_88 = arith.constant 0 : index
    %c0_89 = arith.constant 0 : index
    %166 = vector.load %arg9[%c0_86, %c3_87, %c0_88, %c0_89] : memref<1x4x8x8xbf16, #tpu.memory_space<vmem>>, vector<1x1x8x8xbf16>
    %167 = vector.shape_cast %166 : vector<1x1x8x8xbf16> to vector<8x8xbf16>
    %168 = vector.shape_cast %165 : vector<8x8xbf16> to vector<1x1x8x8xbf16>
    tpu.vector_store %arg9[%c0_86, %c3_87, %c0_88, %c0_89], %168 {strides = array<i32>} : memref<1x4x8x8xbf16, #tpu.memory_space<vmem>>, vector<1x1x8x8xbf16>,
    return
  }
  func.func @transform_0(%arg0: i32, %arg1: i32, %arg2: i32) -> (i32, i32, i32) {
    %c0_i32 = arith.constant 0 : i32
    %c0_i32_0 = arith.constant 0 : i32
    return %arg0, %arg2, %c0_i32 : i32, i32, i32
  }
  func.func @transform_1(%arg0: i32, %arg1: i32, %arg2: i32) -> (i32, i32, i32) {
    %c0_i32 = arith.constant 0 : i32
    %c0_i32_0 = arith.constant 0 : i32
    %c0_i32_1 = arith.constant 0 : i32
    return %c0_i32, %arg2, %c0_i32_0 : i32, i32, i32
  }
  func.func @transform_2(%arg0: i32, %arg1: i32, %arg2: i32) -> (i32, i32, i32) {
    %c0_i32 = arith.constant 0 : i32
    %c0_i32_0 = arith.constant 0 : i32
    %c0_i32_1 = arith.constant 0 : i32
    return %arg1, %c0_i32, %c0_i32_0 : i32, i32, i32
  }
  func.func @transform_3(%arg0: i32, %arg1: i32, %arg2: i32) -> (i32, i32, i32) {
    %c0_i32 = arith.constant 0 : i32
    %c0_i32_0 = arith.constant 0 : i32
    %c0_i32_1 = arith.constant 0 : i32
    return %arg1, %c0_i32, %c0_i32_0 : i32, i32, i32
  }
  func.func @transform_4(%arg0: i32, %arg1: i32, %arg2: i32) -> (i32, i32, i32, i32) {
    %c0_i32 = arith.constant 0 : i32
    %c0_i32_0 = arith.constant 0 : i32
    return %arg0, %arg1, %arg2, %c0_i32 : i32, i32, i32, i32
  }
  func.func @transform_5(%arg0: i32, %arg1: i32, %arg2: i32) -> (i32, i32, i32, i32) {
    %c0_i32 = arith.constant 0 : i32
    %c0_i32_0 = arith.constant 0 : i32
    return %arg0, %arg1, %arg2, %c0_i32 : i32, i32, i32, i32
  }
  func.func @transform_6(%arg0: i32, %arg1: i32, %arg2: i32) -> (i32, i32, i32, i32) {
    %c0_i32 = arith.constant 0 : i32
    %c0_i32_0 = arith.constant 0 : i32
    return %arg0, %arg1, %arg2, %c0_i32 : i32, i32, i32, i32
  }
}

</mosaic_0001>

<llo_original>
// kernel: tpu_custom_call.1
$region0: #{tpu_custom_call.1}
  #allocation0 [shape = 'u32[]', space=smem, size = 0x4, offset = 0x4, fixed_abs, tag = 'smem constant byte address 0x4 - core index']
  #allocation1 [shape = 'u32[144,128]{1,0:T(1,128)}', space=vmem, size = 0x12000, scoped, tag = 'internal scratch']
  %s0 = inlined_call_operand.vmem [shape: bf16[2,8,32], index: 0, kind: input, shape index: {}]
  %s1 = inlined_call_operand.vmem [shape: f32[2,8,4], index: 1, kind: input, shape index: {}]
  %s2 = inlined_call_operand.vmem [shape: bf16[1,32,96], index: 2, kind: input, shape index: {}]
  %s3 = inlined_call_operand.vmem [shape: f32[1,1,96], index: 3, kind: input, shape index: {}]
  %s4 = inlined_call_operand.hbm [shape: bf16[2,4,8,8], index: 4, kind: output, shape index: {0}]
  %s5 = inlined_call_operand.hbm [shape: bf16[2,4,8,8], index: 5, kind: output, shape index: {1}]
  %s6 = inlined_call_operand.hbm [shape: bf16[2,4,8,8], index: 6, kind: output, shape index: {2}]
  %7 = xla_tuple %s4, %s5, %s6
  %s8 = sld [smem:[#allocation0]]
  $region65: #{tpu_custom_call.1} parent=0
    _
  %s10 = ssub.s32 1, %s8
  %s11 = scalar_select 0, %s10, %s8
  $region1: #{tpu_custom_call.1} parent=0
    #allocation2 [shape = 'u8[16384]{0}', space=vmem, size = 0x4000, scoped, tag = 'output window, operand 0']
    #allocation3 [shape = 's32[2]{0}', space=sflag, size = 0x8, scoped, tag = 'scoped memory for tpu_custom_call.1']
    #allocation4 [shape = 'u8[16384]{0}', space=vmem, size = 0x4000, scoped, tag = 'output window, operand 1']
    #allocation5 [shape = 's32[2]{0}', space=sflag, size = 0x8, scoped, tag = 'scoped memory for tpu_custom_call.1']
    #allocation6 [shape = 'u8[16384]{0}', space=vmem, size = 0x4000, scoped, tag = 'output window, operand 2']
    %12 = vsyncpa [#allocation3], 0
    %s13 = scalar_lea.sflag [#allocation3], 1
    %14 = vsyncpa %s13, 0
    %15 = vsyncpa [#allocation5], 0
    %s16 = scalar_lea.sflag [#allocation5], 1
    %17 = vsyncpa %s16, 0
    loop: start=0, step=1, limit=4
    $region2: #{tpu_custom_call.1} parent=1 // loop_pre_header
      _
    $region3: #{tpu_custom_call.1} parent=1 // loop_header
      %s19 = sphi 0, %s23
      %p20 = scmp.ge.s32.totalorder %s19, 4
      %s26 = sphi 0, %s45
      %s27 = sphi 0, %s41
      %s28 = sphi 0, %s37
      %s29 = sphi 0, %s26
      %s30 = sphi 0, %s27
      %s31 = sphi 0, %s28
      %s32 = sphi 0, %s29
      %s33 = sphi 0, %s30
      %s34 = sphi 0, %s31
      %s50 = sphi 0, %s52
      %s53 = sphi 0, %s50
      %s54 = sphi 0, %s53
      %s70 = sphi 0, %s54
      %s76 = sphi 0, %s78
      %s79 = sphi 0, %s76
      %s80 = sphi 0, %s79
      %s96 = sphi 0, %s80
      %s102 = sphi 0, %s104
      %s105 = sphi 0, %s102
      %s106 = sphi 0, %s105
      %s122 = sphi 0, %s106
      %s128 = sphi 0, %s130
      %s131 = sphi 0, %s128
      %s132 = sphi 0, %s131
      %s148 = sphi 0, %s132
      %s158 = sphi 0, %s160
      %s161 = sphi 0, %s158
      %s162 = sphi 0, %s161
      %s178 = sphi 0, %s162
      %s188 = sphi 0, %s190
      %s191 = sphi 0, %s188
      %s192 = sphi 0, %s191
      %s208 = sphi 0, %s192
      %s218 = sphi 0, %s220
      %s221 = sphi 0, %s218
      %s222 = sphi 0, %s221
      %s238 = sphi 0, %s222
    $region4: #{tpu_custom_call.1} parent=1 // loop_header_branch
      %22 = sbr.rel (%p20) target = $region8
    $region5: #{tpu_custom_call.1} parent=1 // loop_body
      %s24 = ssub.s32 %s19, 1
      %s25 = ssub.s32 %s19, 2
      %s35 = sadd.s32 1, %s28
      %p36 = scmp.ge.s32.totalorder %s35, 1
      %s37 = scalar_select %p36, 0, %s35
      %s38 = sadd.s32 1, %s27
      %s39 = scalar_select %p36, %s38, %s27
      %p40 = scmp.ge.s32.totalorder %s39, 1
      %s41 = scalar_select %p40, 0, %s39
      %s42 = sadd.s32 1, %s26
      %s43 = scalar_select %p40, %s42, %s26
      %p44 = scmp.ge.s32.totalorder %s43, 2
      %s45 = scalar_select %p44, 0, %s43
      %s46 = ssub.s32 %s26, %s45
      %s47 = ssub.s32 %s28, %s37
      %s48 = sor.u32 %s46, %s47
      %p49 = scmp.eq.s32.totalorder %s48, 0
      %s51 = sadd.s32 %s50, 1
      %s52 = scalar_select %p49, %s50, %s51
      %p55 = pneg %p49
      %p56 = scmp.eq.s32.totalorder %s19, 1
      %p57 = por %p55, %p56
      %p58 = scmp.ne.s32.totalorder %s50, %s53
      %p59 = scmp.eq.s32.totalorder %s19, 0
      %p60 = por %p58, %p59
      %p61 = scmp.ne.s32.totalorder %s50, %s53
      %p62 = scmp.eq.s32.totalorder %s24, 1
      %p63 = por %p61, %p62
      %p64 = scmp.ne.s32.totalorder %s53, %s54
      %p65 = scmp.eq.s32.totalorder %s24, 0
      %p66 = por %p64, %p65
      %p67 = scmp.ne.s32.totalorder %s53, %s54
      %p68 = scmp.eq.s32.totalorder %s25, 1
      %p69 = por %p67, %p68
      %p71 = scmp.ne.s32.totalorder %s54, %s70
      %p72 = scmp.eq.s32.totalorder %s25, 0
      %p73 = por %p71, %p72
      %s74 = ssub.s32 %s28, %s37
      %p75 = scmp.eq.s32.totalorder %s74, 0
      %s77 = sadd.s32 %s76, 1
      %s78 = scalar_select %p75, %s76, %s77
      %p81 = pneg %p75
      %p82 = scmp.eq.s32.totalorder %s19, 1
      %p83 = por %p81, %p82
      %p84 = scmp.ne.s32.totalorder %s76, %s79
      %p85 = scmp.eq.s32.totalorder %s19, 0
      %p86 = por %p84, %p85
      %p87 = scmp.ne.s32.totalorder %s76, %s79
      %p88 = scmp.eq.s32.totalorder %s24, 1
      %p89 = por %p87, %p88
      %p90 = scmp.ne.s32.totalorder %s79, %s80
      %p91 = scmp.eq.s32.totalorder %s24, 0
      %p92 = por %p90, %p91
      %p93 = scmp.ne.s32.totalorder %s79, %s80
      %p94 = scmp.eq.s32.totalorder %s25, 1
      %p95 = por %p93, %p94
      %p97 = scmp.ne.s32.totalorder %s80, %s96
      %p98 = scmp.eq.s32.totalorder %s25, 0
      %p99 = por %p97, %p98
      %s100 = ssub.s32 %s27, %s41
      %p101 = scmp.eq.s32.totalorder %s100, 0
      %s103 = sadd.s32 %s102, 1
      %s104 = scalar_select %p101, %s102, %s103
      %p107 = pneg %p101
      %p108 = scmp.eq.s32.totalorder %s19, 1
      %p109 = por %p107, %p108
      %p110 = scmp.ne.s32.totalorder %s102, %s105
      %p111 = scmp.eq.s32.totalorder %s19, 0
      %p112 = por %p110, %p111
      %p113 = scmp.ne.s32.totalorder %s102, %s105
      %p114 = scmp.eq.s32.totalorder %s24, 1
      %p115 = por %p113, %p114
      %p116 = scmp.ne.s32.totalorder %s105, %s106
      %p117 = scmp.eq.s32.totalorder %s24, 0
      %p118 = por %p116, %p117
      %p119 = scmp.ne.s32.totalorder %s105, %s106
      %p120 = scmp.eq.s32.totalorder %s25, 1
      %p121 = por %p119, %p120
      %p123 = scmp.ne.s32.totalorder %s106, %s122
      %p124 = scmp.eq.s32.totalorder %s25, 0
      %p125 = por %p123, %p124
      %s126 = ssub.s32 %s27, %s41
      %p127 = scmp.eq.s32.totalorder %s126, 0
      %s129 = sadd.s32 %s128, 1
      %s130 = scalar_select %p127, %s128, %s129
      %p133 = pneg %p127
      %p134 = scmp.eq.s32.totalorder %s19, 1
      %p135 = por %p133, %p134
      %p136 = scmp.ne.s32.totalorder %s128, %s131
      %p137 = scmp.eq.s32.totalorder %s19, 0
      %p138 = por %p136, %p137
      %p139 = scmp.ne.s32.totalorder %s128, %s131
      %p140 = scmp.eq.s32.totalorder %s24, 1
      %p141 = por %p139, %p140
      %p142 = scmp.ne.s32.totalorder %s131, %s132
      %p143 = scmp.eq.s32.totalorder %s24, 0
      %p144 = por %p142, %p143
      %p145 = scmp.ne.s32.totalorder %s131, %s132
      %p146 = scmp.eq.s32.totalorder %s25, 1
      %p147 = por %p145, %p146
      %p149 = scmp.ne.s32.totalorder %s132, %s148
      %p150 = scmp.eq.s32.totalorder %s25, 0
      %p151 = por %p149, %p150
      %s152 = ssub.s32 %s26, %s45
      %s153 = ssub.s32 %s27, %s41
      %s154 = sor.u32 %s152, %s153
      %s155 = ssub.s32 %s28, %s37
      %s156 = sor.u32 %s154, %s155
      %p157 = scmp.eq.s32.totalorder %s156, 0
      %s159 = sadd.s32 %s158, 1
      %s160 = scalar_select %p157, %s158, %s159
      %p163 = pneg %p157
      %p164 = scmp.eq.s32.totalorder %s19, 1
      %p165 = por %p163, %p164
      %p166 = scmp.ne.s32.totalorder %s158, %s161
      %p167 = scmp.eq.s32.totalorder %s19, 0
      %p168 = por %p166, %p167
      %p169 = scmp.ne.s32.totalorder %s158, %s161
      %p170 = scmp.eq.s32.totalorder %s24, 1
      %p171 = por %p169, %p170
      %p172 = scmp.ne.s32.totalorder %s161, %s162
      %p173 = scmp.eq.s32.totalorder %s24, 0
      %p174 = por %p172, %p173
      %p175 = scmp.ne.s32.totalorder %s161, %s162
      %p176 = scmp.eq.s32.totalorder %s25, 1
      %p177 = por %p175, %p176
      %p179 = scmp.ne.s32.totalorder %s162, %s178
      %p180 = scmp.eq.s32.totalorder %s25, 0
      %p181 = por %p179, %p180
      %s182 = ssub.s32 %s26, %s45
      %s183 = ssub.s32 %s27, %s41
      %s184 = sor.u32 %s182, %s183
      %s185 = ssub.s32 %s28, %s37
      %s186 = sor.u32 %s184, %s185
      %p187 = scmp.eq.s32.totalorder %s186, 0
      %s189 = sadd.s32 %s188, 1
      %s190 = scalar_select %p187, %s188, %s189
      %p193 = pneg %p187
      %p194 = scmp.eq.s32.totalorder %s19, 1
      %p195 = por %p193, %p194
      %p196 = scmp.ne.s32.totalorder %s188, %s191
      %p197 = scmp.eq.s32.totalorder %s19, 0
      %p198 = por %p196, %p197
      %p199 = scmp.ne.s32.totalorder %s188, %s191
      %p200 = scmp.eq.s32.totalorder %s24, 1
      %p201 = por %p199, %p200
      %p202 = scmp.ne.s32.totalorder %s191, %s192
      %p203 = scmp.eq.s32.totalorder %s24, 0
      %p204 = por %p202, %p203
      %p205 = scmp.ne.s32.totalorder %s191, %s192
      %p206 = scmp.eq.s32.totalorder %s25, 1
      %p207 = por %p205, %p206
      %p209 = scmp.ne.s32.totalorder %s192, %s208
      %p210 = scmp.eq.s32.totalorder %s25, 0
      %p211 = por %p209, %p210
      %s212 = ssub.s32 %s26, %s45
      %s213 = ssub.s32 %s27, %s41
      %s214 = sor.u32 %s212, %s213
      %s215 = ssub.s32 %s28, %s37
      %s216 = sor.u32 %s214, %s215
      %p217 = scmp.eq.s32.totalorder %s216, 0
      %s219 = sadd.s32 %s218, 1
      %s220 = scalar_select %p217, %s218, %s219
      %p223 = pneg %p217
      %p224 = scmp.eq.s32.totalorder %s19, 1
      %p225 = por %p223, %p224
      %p226 = scmp.ne.s32.totalorder %s218, %s221
      %p227 = scmp.eq.s32.totalorder %s19, 0
      %p228 = por %p226, %p227
      %p229 = scmp.ne.s32.totalorder %s218, %s221
      %p230 = scmp.eq.s32.totalorder %s24, 1
      %p231 = por %p229, %p230
      %p232 = scmp.ne.s32.totalorder %s221, %s222
      %p233 = scmp.eq.s32.totalorder %s24, 0
      %p234 = por %p232, %p233
      %p235 = scmp.ne.s32.totalorder %s221, %s222
      %p236 = scmp.eq.s32.totalorder %s25, 1
      %p237 = por %p235, %p236
      %p239 = scmp.ne.s32.totalorder %s222, %s238
      %p240 = scmp.eq.s32.totalorder %s25, 0
      %p241 = por %p239, %p240
      %p242 = scmp.le.s32.totalorder 1, %s19
      %p243 = scmp.lt.s32.totalorder %s19, 3
      %p244 = pnand %p242, %p243
      %p245 = pneg %p244
      // Predicated region
      $region9: #{tpu_custom_call.1} parent=5 // pred_check
        _
      $region10: #{tpu_custom_call.1} parent=5 // pred_check_branch
        %247 = sbr.rel (%p244) target = $region12
      $region11: #{tpu_custom_call.1} parent=5 // pred_region
        %s248 = ssub.s32 %s19, 1
        // Predicated region
        $region13: #{tpu_custom_call.1} parent=11 // pred_check
          %p249 = pneg %p92
        $region14: #{tpu_custom_call.1} parent=11 // pred_check_branch
          %251 = sbr.rel (%p249) target = $region16
        $region15: #{tpu_custom_call.1} parent=11 // pred_region
          %p252 = scmp.lt.s32.totalorder %s31, 0
          %s253 = scalar_select %p252, %s31, 0
          %s254 = smul.addr %s253, 8
          %s255 = scalar_lea.vmem %s1, %s254
        $region16: #{tpu_custom_call.1} parent=11 // pred_fallthru
          _
        // Predicated region
        $region17: #{tpu_custom_call.1} parent=11 // pred_check
          %p256 = pneg %p118
        $region18: #{tpu_custom_call.1} parent=11 // pred_check_branch
          %258 = sbr.rel (%p256) target = $region20
        $region19: #{tpu_custom_call.1} parent=11 // pred_region
          %p259 = scmp.lt.s32.totalorder %s30, 0
          %s260 = scalar_select %p259, %s30, 0
          %s261 = smul.addr %s260, 4
          %s262 = smul.addr %s261, 4
          %s263 = scalar_lea.vmem %s2, %s262
        $region20: #{tpu_custom_call.1} parent=11 // pred_fallthru
          _
        // Predicated region
        $region21: #{tpu_custom_call.1} parent=11 // pred_check
          %p264 = pneg %p144
        $region22: #{tpu_custom_call.1} parent=11 // pred_check_branch
          %266 = sbr.rel (%p264) target = $region24
        $region23: #{tpu_custom_call.1} parent=11 // pred_region
          %p267 = scmp.lt.s32.totalorder %s30, 0
          %s268 = scalar_select %p267, %s30, 0
          %s269 = scalar_lea.vmem %s3, %s268
        $region24: #{tpu_custom_call.1} parent=11 // pred_fallthru
          _
      $region12: #{tpu_custom_call.1} parent=5 // pred_fallthru
        _
      %p270 = scmp.lt.s32.totalorder %s19, 2
      // Predicated region
      $region25: #{tpu_custom_call.1} parent=5 // pred_check
        %p271 = pneg %p270
      $region26: #{tpu_custom_call.1} parent=5 // pred_check_branch
        %273 = sbr.rel (%p271) target = $region28
      $region27: #{tpu_custom_call.1} parent=5 // pred_region
        // Predicated region
        $region29: #{tpu_custom_call.1} parent=27 // pred_check
          %p274 = pneg %p60
        $region30: #{tpu_custom_call.1} parent=27 // pred_check_branch
          %276 = sbr.rel (%p274) target = $region32
        $region31: #{tpu_custom_call.1} parent=27 // pred_region
          %p277 = scmp.lt.s32.totalorder %s26, 1
          %s278 = scalar_select %p277, %s26, 1
          %p279 = scmp.lt.s32.totalorder %s28, 0
          %s280 = scalar_select %p279, %s28, 0
          %s281 = sadd.s32 %s280, %s278
          %s282 = smul.addr %s281, 4
          %s283 = scalar_lea.vmem %s0, %s282
        $region32: #{tpu_custom_call.1} parent=27 // pred_fallthru
          _
      $region28: #{tpu_custom_call.1} parent=5 // pred_fallthru
        _
      %p284 = scmp.le.s32.totalorder 1, %s19
      %p285 = scmp.lt.s32.totalorder %s19, 3
      %p286 = pnand %p284, %p285
      %p287 = pneg %p286
      // Predicated region
      $region33: #{tpu_custom_call.1} parent=5 // pred_check
        _
      $region34: #{tpu_custom_call.1} parent=5 // pred_check_branch
        %289 = sbr.rel (%p286) target = $region36
      $region35: #{tpu_custom_call.1} parent=5 // pred_region
        %s290 = ssub.s32 %s19, 1
        %p291 = scmp.lt.s32.totalorder %s29, 1
        %s292 = scalar_select %p291, %s29, 1
        %p293 = scmp.lt.s32.totalorder %s31, 0
        %s294 = scalar_select %p293, %s31, 0
        %s295 = sadd.s32 %s294, %s292
        %s296 = smul.addr %s295, 4
        %s297 = scalar_lea.vmem %s0, %s296
        %p298 = pneg %p66
        %p299 = pneg %p63
        %p300 = scmp.lt.s32.totalorder %s31, 0
        %s301 = scalar_select %p300, %s31, 0
        %s302 = smul.addr %s301, 8
        %s303 = scalar_lea.vmem %s1, %s302
        %p304 = pneg %p92
        %p305 = pneg %p89
        %p306 = scmp.lt.s32.totalorder %s30, 0
        %s307 = scalar_select %p306, %s30, 0
        %s308 = smul.addr %s307, 4
        %s309 = smul.addr %s308, 4
        %s310 = scalar_lea.vmem %s2, %s309
        %p311 = pneg %p118
        %p312 = pneg %p115
        %p313 = scmp.lt.s32.totalorder %s30, 0
        %s314 = scalar_select %p313, %s30, 0
        %s315 = scalar_lea.vmem %s3, %s314
        %p316 = pneg %p144
        %p317 = pneg %p141
        %p318 = pneg %p174
        %p319 = pneg %p171
        %s320 = sand.u32 %s161, 1
        %s321 = scalar_lea.sflag [#allocation3], %s320
        %s322 = sand.u32 %s161, 1
        %s323 = smul.addr %s322, 16
        %s324 = scalar_lea.vmem [#allocation2], %s323
        %p325 = pneg %p204
        %p326 = pneg %p201
        %s327 = sand.u32 %s24, 1
        %s328 = scalar_lea.sflag [#allocation5], %s327
        %s329 = sand.u32 %s191, 1
        %s330 = smul.addr %s329, 16
        %s331 = scalar_lea.vmem [#allocation4], %s330
        %p332 = pneg %p234
        %p333 = pneg %p231
        %s334 = sand.u32 %s24, 1
        %s335 = scalar_lea.sflag [#allocation5], %s334
        %s336 = sand.u32 %s221, 1
        %s337 = smul.addr %s336, 16
        %s338 = scalar_lea.vmem [#allocation6], %s337
        %p339 = scmp.lt.s32.totalorder %s29, 1
        %s340 = scalar_select %p339, %s29, 1
        %p341 = scmp.lt.s32.totalorder %s31, 0
        %s342 = scalar_select %p341, %s31, 0
        %s343 = sadd.s32 %s342, %s340
        %s344 = smul.addr %s343, 4
        %s345 = scalar_lea.vmem %s0, %s344
        %p346 = scmp.lt.s32.totalorder %s31, 0
        %s347 = scalar_select %p346, %s31, 0
        %s348 = smul.addr %s347, 8
        %s349 = scalar_lea.vmem %s1, %s348
        %p350 = scmp.lt.s32.totalorder %s30, 0
        %s351 = scalar_select %p350, %s30, 0
        %s352 = smul.addr %s351, 4
        %s353 = smul.addr %s352, 4
        %s354 = scalar_lea.vmem %s2, %s353
        %p355 = scmp.lt.s32.totalorder %s30, 0
        %s356 = scalar_select %p355, %s30, 0
        %s357 = scalar_lea.vmem %s3, %s356
        %s358 = smul.u32 4, %s30
        %s359 = smul.u32 4, %s30
        %s360 = smul.u32 4, %s30
        %v362 = vld [vmem:[%s345] sm:$0xf]
        %v363 = vld [vmem:[%s354] sm:$0xf]
        %v364 = vld [vmem:[%s354 + $0x4] sm:$0xf]
        %v365 = vld [vmem:[%s354 + $0x8] sm:$0xf]
        %v366 = vld [vmem:[%s354 + $0xc] sm:$0xf]
        %v367 = vld [vmem:[%s357] sm:$0x1]
        %v369 = vlaneseq
        %v370 = vshrl.u32 %v369, 7
        %v371 = vsub.s32 0, %v370
        %v372 = vrot.slane %v367, %v371
        %v378 = vunpack.c.l.b16 %v363
        %v379 = vunpack.c.l.b16 %v364
        %v380 = vunpack.c.l.b16 %v365
        %v381 = vunpack.c.l.b16 %v366
        %v382 = vpack.c.b16 %v379, %v378
        %v383 = vpack.c.b16 %v381, %v380
        %vm386 = vcmask 261120
        %v388 = vsel %vm386, %v362, 0
        %390 = vmatprep.subr.bf16.mxu0 0
        %391 = vmatpush1.bf16.msra.mxu0 %v382
        %392 = vmatprep.subr.bf16.mxu0 0
        %393 = vmatpush1.bf16.msra.mxu0 %v383
        %394 = vmatprep.subr.bf16.mxu0 0
        %395 = vmatpush1.bf16.msra.mxu0 0
        %396 = vmatprep.subr.bf16.mxu0 0
        %397 = vmatpush1.bf16.msra.mxu0 0
        %398 = vmatprep.subr.bf16.mxu0 0
        %399 = vmatpush1.bf16.msra.mxu0 0
        %400 = vmatprep.subr.bf16.mxu0 0
        %401 = vmatpush1.bf16.msra.mxu0 0
        %402 = vmatprep.subr.bf16.mxu0 0
        %403 = vmatpush1.bf16.msra.mxu0 0
        %404 = vmatprep.subr.bf16.mxu0 0
        %405 = vmatpush1.bf16.msra.mxu0 0
        %406 = vmatprep.subr.bf16.mxu0 0
        %407 = vmatpush1.bf16.msra.mxu0 0
        %408 = vmatprep.subr.bf16.mxu0 0
        %409 = vmatpush1.bf16.msra.mxu0 0
        %410 = vmatprep.subr.bf16.mxu0 0
        %411 = vmatpush1.bf16.msra.mxu0 0
        %412 = vmatprep.subr.bf16.mxu0 0
        %413 = vmatpush1.bf16.msra.mxu0 0
        %414 = vmatprep.subr.bf16.mxu0 0
        %415 = vmatpush1.bf16.msra.mxu0 0
        %416 = vmatprep.subr.bf16.mxu0 0
        %417 = vmatpush1.bf16.msra.mxu0 0
        %418 = vmatprep.subr.bf16.mxu0 0
        %419 = vmatpush1.bf16.msra.mxu0 0
        %420 = vmatprep.subr.bf16.mxu0 0
        %421 = vmatpush1.bf16.msra.mxu0 0
        %422 = vmatprep.mubr.bf16.mxu0 0
        %423 = vmatmul.mubr.bf16.gmra.mrb[0].mxu0 %v388
        %v424 = vpop.f32.mrb[0].mxu0
        %v425 = vadd.f32 %v372, %v424
        %v426 = vpop.f32.mrb[0].mxu0
        %v427 = vpop.f32.mrb[0].mxu0
        %v428 = vpop.f32.mrb[0].mxu0
        %429 = vdwg.mxu0
        %v430 = vld [vmem:[%s349] sm:$0xff]
        %s431 = scalar_lea.vmem %s349, 8
        %v432 = vld [vmem:[%s431] sm:$0xff]
        %v433 = vmul.f32 %v425, %v430
        %435 = vrot.lane.b32.xlu0 %v432, 4
        %v436 = vpop.permute.xlu0 %435
        %v438 = vmul.f32 %v425, %v436
        %440 = vrot.lane.b32.xlu0 %v438, 124
        %v441 = vpop.permute.xlu0 %440
        %v443 = vsub.f32 %v433, %v441
        %v444 = vpack.c.bf16 %v443, %v443
        %vm445 = vcmask 27648
        %446 = vst.msk [vmem:[%s324] sm:$0xf] %vm445, %v444
        %v447 = vmul.f32 %v425, %v432
        %449 = vrot.lane.b32.xlu0 %v430, 4
        %v450 = vpop.permute.xlu0 %449
        %v452 = vmul.f32 %v425, %v450
        %454 = vrot.lane.b32.xlu0 %v452, 124
        %v455 = vpop.permute.xlu0 %454
        %v457 = vadd.f32 %v447, %v455
        %v458 = vpack.c.bf16 %v457, %v457
        %v460 = vunpack.c.l.b16 %v458
        %v461 = vpack.c.b16 %v460, %v460
        %462 = vrot.lane.b32.xlu0 %v461, 4
        %v463 = vpop.permute.xlu0 %462
        %vm465 = vcmask 60448
        %466 = vst.msk [vmem:[%s324] sm:$0xf] %vm465, %v463
        %467 = vrot.lane.b32.xlu0 %v430, 32
        %v468 = vpop.permute.xlu0 %467
        %v470 = vmul.f32 %v425, %v468
        %471 = vrot.lane.b32.xlu0 %v432, 36
        %v472 = vpop.permute.xlu0 %471
        %v474 = vmul.f32 %v425, %v472
        %476 = vrot.lane.b32.xlu0 %v474, 124
        %v477 = vpop.permute.xlu0 %476
        %v479 = vsub.f32 %v470, %v477
        %v480 = vpack.c.bf16 %v479, %v479
        %v482 = vunpack.c.l.b16 %v480
        %v483 = vpack.c.b16 %v482, %v482
        %484 = vrot.lane.b32.xlu0 %v483, 96
        %v485 = vpop.permute.xlu0 %484
        %487 = vst.msk [vmem:[%s331] sm:$0xf] %vm445, %v485
        %488 = vrot.lane.b32.xlu0 %v432, 32
        %v489 = vpop.permute.xlu0 %488
        %v491 = vmul.f32 %v425, %v489
        %492 = vrot.lane.b32.xlu0 %v430, 36
        %v493 = vpop.permute.xlu0 %492
        %v495 = vmul.f32 %v425, %v493
        %497 = vrot.lane.b32.xlu0 %v495, 124
        %v498 = vpop.permute.xlu0 %497
        %v500 = vadd.f32 %v491, %v498
        %v501 = vpack.c.bf16 %v500, %v500
        %v503 = vunpack.c.l.b16 %v501
        %v504 = vpack.c.b16 %v503, %v503
        %505 = vrot.lane.b32.xlu0 %v504, 100
        %v506 = vpop.permute.xlu0 %505
        %508 = vst.msk [vmem:[%s331] sm:$0xf] %vm465, %v506
        %v509 = vpack.c.bf16 %v425, %v425
        %v511 = vunpack.c.l.b16 %v509
        %v512 = vpack.c.b16 %v511, %v511
        %513 = vrot.lane.b32.xlu0 %v512, 64
        %v514 = vpop.permute.xlu0 %513
        %vm516 = vcmask 60416
        %517 = vst.msk [vmem:[%s338] sm:$0xf] %vm516, %v514
        %518 = vrot.lane.b32.xlu0 %v430, 8
        %v519 = vpop.permute.xlu0 %518
        %v521 = vmul.f32 %v425, %v519
        %522 = vrot.lane.b32.xlu0 %v432, 12
        %v523 = vpop.permute.xlu0 %522
        %v525 = vmul.f32 %v425, %v523
        %527 = vrot.lane.b32.xlu0 %v525, 124
        %v528 = vpop.permute.xlu0 %527
        %v530 = vsub.f32 %v521, %v528
        %v531 = vpack.c.bf16 %v530, %v530
        %v533 = vunpack.c.l.b16 %v531
        %v534 = vpack.c.b16 %v533, %v533
        %535 = vrot.lane.b32.xlu0 %v534, 120
        %v536 = vpop.permute.xlu0 %535
        %s538 = scalar_lea.vmem %s324, 4 [#allocation2]
        %539 = vst.msk [vmem:[%s538] sm:$0xf] %vm445, %v536
        %540 = vrot.lane.b32.xlu0 %v432, 8
        %v541 = vpop.permute.xlu0 %540
        %v543 = vmul.f32 %v425, %v541
        %544 = vrot.lane.b32.xlu0 %v430, 12
        %v545 = vpop.permute.xlu0 %544
        %v547 = vmul.f32 %v425, %v545
        %549 = vrot.lane.b32.xlu0 %v547, 124
        %v550 = vpop.permute.xlu0 %549
        %v552 = vadd.f32 %v543, %v550
        %v553 = vpack.c.bf16 %v552, %v552
        %v555 = vunpack.c.l.b16 %v553
        %v556 = vpack.c.b16 %v555, %v555
        %557 = vrot.lane.b32.xlu0 %v556, 124
        %v558 = vpop.permute.xlu0 %557
        %560 = vst.msk [vmem:[%s538] sm:$0xf] %vm465, %v558
        %561 = vrot.lane.b32.xlu0 %v430, 40
        %v562 = vpop.permute.xlu0 %561
        %v564 = vmul.f32 %v425, %v562
        %565 = vrot.lane.b32.xlu0 %v432, 44
        %v566 = vpop.permute.xlu0 %565
        %v568 = vmul.f32 %v425, %v566
        %570 = vrot.lane.b32.xlu0 %v568, 124
        %v571 = vpop.permute.xlu0 %570
        %v573 = vsub.f32 %v564, %v571
        %v574 = vpack.c.bf16 %v573, %v573
        %v576 = vunpack.c.l.b16 %v574
        %v577 = vpack.c.b16 %v576, %v576
        %578 = vrot.lane.b32.xlu0 %v577, 88
        %v579 = vpop.permute.xlu0 %578
        %s581 = scalar_lea.vmem %s331, 4 [#allocation4]
        %582 = vst.msk [vmem:[%s581] sm:$0xf] %vm445, %v579
        %583 = vrot.lane.b32.xlu0 %v432, 40
        %v584 = vpop.permute.xlu0 %583
        %v586 = vmul.f32 %v425, %v584
        %587 = vrot.lane.b32.xlu0 %v430, 44
        %v588 = vpop.permute.xlu0 %587
        %v590 = vmul.f32 %v425, %v588
        %592 = vrot.lane.b32.xlu0 %v590, 124
        %v593 = vpop.permute.xlu0 %592
        %v595 = vadd.f32 %v586, %v593
        %v596 = vpack.c.bf16 %v595, %v595
        %v598 = vunpack.c.l.b16 %v596
        %v599 = vpack.c.b16 %v598, %v598
        %600 = vrot.lane.b32.xlu0 %v599, 92
        %v601 = vpop.permute.xlu0 %600
        %603 = vst.msk [vmem:[%s581] sm:$0xf] %vm465, %v601
        %604 = vrot.lane.b32.xlu0 %v512, 56
        %v605 = vpop.permute.xlu0 %604
        %s607 = scalar_lea.vmem %s338, 4 [#allocation6]
        %608 = vst.msk [vmem:[%s607] sm:$0xf] %vm516, %v605
        %609 = vrot.lane.b32.xlu0 %v430, 16
        %v610 = vpop.permute.xlu0 %609
        %v612 = vmul.f32 %v425, %v610
        %613 = vrot.lane.b32.xlu0 %v432, 20
        %v614 = vpop.permute.xlu0 %613
        %v616 = vmul.f32 %v425, %v614
        %618 = vrot.lane.b32.xlu0 %v616, 124
        %v619 = vpop.permute.xlu0 %618
        %v621 = vsub.f32 %v612, %v619
        %v622 = vpack.c.bf16 %v621, %v621
        %v624 = vunpack.c.l.b16 %v622
        %v625 = vpack.c.b16 %v624, %v624
        %626 = vrot.lane.b32.xlu0 %v625, 112
        %v627 = vpop.permute.xlu0 %626
        %s629 = scalar_lea.vmem %s324, 8 [#allocation2]
        %630 = vst.msk [vmem:[%s629] sm:$0xf] %vm445, %v627
        %631 = vrot.lane.b32.xlu0 %v432, 16
        %v632 = vpop.permute.xlu0 %631
        %v634 = vmul.f32 %v425, %v632
        %635 = vrot.lane.b32.xlu0 %v430, 20
        %v636 = vpop.permute.xlu0 %635
        %v638 = vmul.f32 %v425, %v636
        %640 = vrot.lane.b32.xlu0 %v638, 124
        %v641 = vpop.permute.xlu0 %640
        %v643 = vadd.f32 %v634, %v641
        %v644 = vpack.c.bf16 %v643, %v643
        %v646 = vunpack.c.l.b16 %v644
        %v647 = vpack.c.b16 %v646, %v646
        %648 = vrot.lane.b32.xlu0 %v647, 116
        %v649 = vpop.permute.xlu0 %648
        %651 = vst.msk [vmem:[%s629] sm:$0xf] %vm465, %v649
        %652 = vrot.lane.b32.xlu0 %v430, 48
        %v653 = vpop.permute.xlu0 %652
        %v655 = vmul.f32 %v425, %v653
        %656 = vrot.lane.b32.xlu0 %v432, 52
        %v657 = vpop.permute.xlu0 %656
        %v659 = vmul.f32 %v425, %v657
        %661 = vrot.lane.b32.xlu0 %v659, 124
        %v662 = vpop.permute.xlu0 %661
        %v664 = vsub.f32 %v655, %v662
        %v665 = vpack.c.bf16 %v664, %v664
        %v667 = vunpack.c.l.b16 %v665
        %v668 = vpack.c.b16 %v667, %v667
        %669 = vrot.lane.b32.xlu0 %v668, 80
        %v670 = vpop.permute.xlu0 %669
        %s672 = scalar_lea.vmem %s331, 8 [#allocation4]
        %673 = vst.msk [vmem:[%s672] sm:$0xf] %vm445, %v670
        %674 = vrot.lane.b32.xlu0 %v432, 48
        %v675 = vpop.permute.xlu0 %674
        %v677 = vmul.f32 %v425, %v675
        %678 = vrot.lane.b32.xlu0 %v430, 52
        %v679 = vpop.permute.xlu0 %678
        %v681 = vmul.f32 %v425, %v679
        %683 = vrot.lane.b32.xlu0 %v681, 124
        %v684 = vpop.permute.xlu0 %683
        %v686 = vadd.f32 %v677, %v684
        %v687 = vpack.c.bf16 %v686, %v686
        %v689 = vunpack.c.l.b16 %v687
        %v690 = vpack.c.b16 %v689, %v689
        %691 = vrot.lane.b32.xlu0 %v690, 84
        %v692 = vpop.permute.xlu0 %691
        %694 = vst.msk [vmem:[%s672] sm:$0xf] %vm465, %v692
        %695 = vrot.lane.b32.xlu0 %v512, 48
        %v696 = vpop.permute.xlu0 %695
        %s698 = scalar_lea.vmem %s338, 8 [#allocation6]
        %699 = vst.msk [vmem:[%s698] sm:$0xf] %vm516, %v696
        %700 = vrot.lane.b32.xlu0 %v430, 24
        %v701 = vpop.permute.xlu0 %700
        %v703 = vmul.f32 %v425, %v701
        %704 = vrot.lane.b32.xlu0 %v432, 28
        %v705 = vpop.permute.xlu0 %704
        %v707 = vmul.f32 %v425, %v705
        %709 = vrot.lane.b32.xlu0 %v707, 124
        %v710 = vpop.permute.xlu0 %709
        %v712 = vsub.f32 %v703, %v710
        %v713 = vpack.c.bf16 %v712, %v712
        %v715 = vunpack.c.l.b16 %v713
        %v716 = vpack.c.b16 %v715, %v715
        %717 = vrot.lane.b32.xlu0 %v716, 104
        %v718 = vpop.permute.xlu0 %717
        %s720 = scalar_lea.vmem %s324, 12 [#allocation2]
        %721 = vst.msk [vmem:[%s720] sm:$0xf] %vm445, %v718
        %722 = vrot.lane.b32.xlu0 %v432, 24
        %v723 = vpop.permute.xlu0 %722
        %v725 = vmul.f32 %v425, %v723
        %726 = vrot.lane.b32.xlu0 %v430, 28
        %v727 = vpop.permute.xlu0 %726
        %v729 = vmul.f32 %v425, %v727
        %731 = vrot.lane.b32.xlu0 %v729, 124
        %v732 = vpop.permute.xlu0 %731
        %v734 = vadd.f32 %v725, %v732
        %v735 = vpack.c.bf16 %v734, %v734
        %v737 = vunpack.c.l.b16 %v735
        %v738 = vpack.c.b16 %v737, %v737
        %739 = vrot.lane.b32.xlu0 %v738, 108
        %v740 = vpop.permute.xlu0 %739
        %742 = vst.msk [vmem:[%s720] sm:$0xf] %vm465, %v740
        %743 = vrot.lane.b32.xlu0 %v430, 56
        %v744 = vpop.permute.xlu0 %743
        %v746 = vmul.f32 %v425, %v744
        %747 = vrot.lane.b32.xlu0 %v432, 60
        %v748 = vpop.permute.xlu0 %747
        %v750 = vmul.f32 %v425, %v748
        %752 = vrot.lane.b32.xlu0 %v750, 124
        %v753 = vpop.permute.xlu0 %752
        %v755 = vsub.f32 %v746, %v753
        %v756 = vpack.c.bf16 %v755, %v755
        %v758 = vunpack.c.l.b16 %v756
        %v759 = vpack.c.b16 %v758, %v758
        %760 = vrot.lane.b32.xlu0 %v759, 72
        %v761 = vpop.permute.xlu0 %760
        %s763 = scalar_lea.vmem %s331, 12 [#allocation4]
        %764 = vst.msk [vmem:[%s763] sm:$0xf] %vm445, %v761
        %765 = vrot.lane.b32.xlu0 %v432, 56
        %v766 = vpop.permute.xlu0 %765
        %v768 = vmul.f32 %v425, %v766
        %769 = vrot.lane.b32.xlu0 %v430, 60
        %v770 = vpop.permute.xlu0 %769
        %v772 = vmul.f32 %v425, %v770
        %774 = vrot.lane.b32.xlu0 %v772, 124
        %v775 = vpop.permute.xlu0 %774
        %v777 = vadd.f32 %v768, %v775
        %v778 = vpack.c.bf16 %v777, %v777
        %v780 = vunpack.c.l.b16 %v778
        %v781 = vpack.c.b16 %v780, %v780
        %782 = vrot.lane.b32.xlu0 %v781, 76
        %v783 = vpop.permute.xlu0 %782
        %785 = vst.msk [vmem:[%s763] sm:$0xf] %vm465, %v783
        %786 = vrot.lane.b32.xlu0 %v512, 40
        %v787 = vpop.permute.xlu0 %786
        %s789 = scalar_lea.vmem %s338, 12 [#allocation6]
        %790 = vst.msk [vmem:[%s789] sm:$0xf] %vm516, %v787
        %s791 = sand.u32 %s161, 1
        %s792 = scalar_lea.sflag [#allocation3], %s791
        %s793 = sand.u32 %s161, 1
        %s794 = smul.addr %s793, 16
        %s795 = scalar_lea.vmem [#allocation2], %s794
        %s796 = sand.u32 %s24, 1
        %s797 = scalar_lea.sflag [#allocation5], %s796
        %s798 = sand.u32 %s191, 1
        %s799 = smul.addr %s798, 16
        %s800 = scalar_lea.vmem [#allocation4], %s799
        %s801 = sand.u32 %s24, 1
        %s802 = scalar_lea.sflag [#allocation5], %s801
        %s803 = sand.u32 %s221, 1
        %s804 = smul.addr %s803, 16
        %s805 = scalar_lea.vmem [#allocation6], %s804
        // Predicated region
        $region37: #{tpu_custom_call.1} parent=35 // pred_check
          %p806 = pneg %p171
        $region38: #{tpu_custom_call.1} parent=35 // pred_check_branch
          %808 = sbr.rel (%p806) target = $region40
        $region39: #{tpu_custom_call.1} parent=35 // pred_region
          %s809 = smul.u32 4, %s30
          %s811 = ssub.s32 256, 256
          %812 = vsyncadd %s792, %s811
          %s813 = sadd.s32 %s31, %s809
          %s814 = smul.addr %s29, 4
          %s815 = sadd.s32 %s813, %s814
          %s816 = smul.addr %s815, 64
          %s817 = scalar_lea.hbm %s4, %s816
          %s818 = sshll.u32 %s795, 4
          %s819 = int_to_ptr.vmem [resolvable:$true] %s818
          %824 = dma.vmem_to_hbm [thread:$0]  %s819, 256, %s817, %s792, 64, 64, 4
        $region40: #{tpu_custom_call.1} parent=35 // pred_fallthru
          _
        // Predicated region
        $region41: #{tpu_custom_call.1} parent=35 // pred_check
          %p825 = pneg %p201
        $region42: #{tpu_custom_call.1} parent=35 // pred_check_branch
          %827 = sbr.rel (%p825) target = $region44
        $region43: #{tpu_custom_call.1} parent=35 // pred_region
          %s828 = smul.u32 4, %s30
          %s830 = ssub.s32 256, 256
          %831 = vsyncadd %s797, %s830
          %s832 = sadd.s32 %s31, %s828
          %s833 = smul.addr %s29, 4
          %s834 = sadd.s32 %s832, %s833
          %s835 = smul.addr %s834, 64
          %s836 = scalar_lea.hbm %s5, %s835
          %s837 = sshll.u32 %s800, 4
          %s838 = int_to_ptr.vmem [resolvable:$true] %s837
          %843 = dma.vmem_to_hbm [thread:$0]  %s838, 256, %s836, %s797, 64, 64, 4
        $region44: #{tpu_custom_call.1} parent=35 // pred_fallthru
          _
        // Predicated region
        $region45: #{tpu_custom_call.1} parent=35 // pred_check
          %p844 = pneg %p231
        $region46: #{tpu_custom_call.1} parent=35 // pred_check_branch
          %846 = sbr.rel (%p844) target = $region48
        $region47: #{tpu_custom_call.1} parent=35 // pred_region
          %s847 = smul.u32 4, %s30
          %s849 = ssub.s32 256, 256
          %850 = vsyncadd %s802, %s849
          %s851 = sadd.s32 %s31, %s847
          %s852 = smul.addr %s29, 4
          %s853 = sadd.s32 %s851, %s852
          %s854 = smul.addr %s853, 64
          %s855 = scalar_lea.hbm %s6, %s854
          %s856 = sshll.u32 %s805, 4
          %s857 = int_to_ptr.vmem [resolvable:$true] %s856
          %862 = dma.vmem_to_hbm [thread:$0]  %s857, 256, %s855, %s802, 64, 64, 4
        $region48: #{tpu_custom_call.1} parent=35 // pred_fallthru
          _
      $region36: #{tpu_custom_call.1} parent=5 // pred_fallthru
        _
      %p863 = scmp.le.s32.totalorder 2, %s19
      // Predicated region
      $region49: #{tpu_custom_call.1} parent=5 // pred_check
        %p864 = pneg %p863
      $region50: #{tpu_custom_call.1} parent=5 // pred_check_branch
        %866 = sbr.rel (%p864) target = $region52
      $region51: #{tpu_custom_call.1} parent=5 // pred_region
        %s867 = ssub.s32 %s19, 2
        // Predicated region
        $region53: #{tpu_custom_call.1} parent=51 // pred_check
          %p868 = pneg %p177
        $region54: #{tpu_custom_call.1} parent=51 // pred_check_branch
          %870 = sbr.rel (%p868) target = $region56
        $region55: #{tpu_custom_call.1} parent=51 // pred_region
          %s871 = sand.u32 %s162, 1
          %s872 = scalar_lea.sflag [#allocation3], %s871
          %s873 = sand.u32 %s162, 1
          %s874 = smul.addr %s873, 16
          %s875 = scalar_lea.vmem [#allocation2], %s874
          %876 = dma.done %s872, 256
        $region56: #{tpu_custom_call.1} parent=51 // pred_fallthru
          _
        // Predicated region
        $region57: #{tpu_custom_call.1} parent=51 // pred_check
          %p877 = pneg %p207
        $region58: #{tpu_custom_call.1} parent=51 // pred_check_branch
          %879 = sbr.rel (%p877) target = $region60
        $region59: #{tpu_custom_call.1} parent=51 // pred_region
          %s880 = sand.u32 %s25, 1
          %s881 = scalar_lea.sflag [#allocation5], %s880
          %s882 = sand.u32 %s192, 1
          %s883 = smul.addr %s882, 16
          %s884 = scalar_lea.vmem [#allocation4], %s883
          %885 = dma.done %s881, 256
        $region60: #{tpu_custom_call.1} parent=51 // pred_fallthru
          _
        // Predicated region
        $region61: #{tpu_custom_call.1} parent=51 // pred_check
          %p886 = pneg %p237
        $region62: #{tpu_custom_call.1} parent=51 // pred_check_branch
          %888 = sbr.rel (%p886) target = $region64
        $region63: #{tpu_custom_call.1} parent=51 // pred_region
          %s889 = sand.u32 %s25, 1
          %s890 = scalar_lea.sflag [#allocation5], %s889
          %s891 = sand.u32 %s222, 1
          %s892 = smul.addr %s891, 16
          %s893 = scalar_lea.vmem [#allocation6], %s892
          %894 = dma.done %s890, 256
        $region64: #{tpu_custom_call.1} parent=51 // pred_fallthru
          _
      $region52: #{tpu_custom_call.1} parent=5 // pred_fallthru
        _
    $region6: #{tpu_custom_call.1} parent=1 // loop_footer
      %s23 = sadd.s32 1, %s19
    $region7: #{tpu_custom_call.1} parent=1 // loop_footer_branch
      %18 = sbr.rel target = $region3
    $region8: #{tpu_custom_call.1} parent=1 // loop_exit
      _
    %895 = vsyncpa [#allocation3], 1
    %s896 = scalar_lea.sflag [#allocation3], 1
    %897 = vsyncpa %s896, 1
    %898 = vsyncpa [#allocation5], 1
    %s899 = scalar_lea.sflag [#allocation5], 1
    %900 = vsyncpa %s899, 1

</llo_original>
